<compile_context>
chip_gen: v5e
topology: v5e:2x2
jax: 0.10.0
libtpu: 0.0.40
codegen_flags: <defaults>
</compile_context>

<pallas_src>
import jax
import jax.numpy as jnp
from jax.experimental import pallas as pl
from jax.experimental.pallas import tpu as pltpu


# ---------------------------------------------------------------------------
# Single-pass fused kernel: weighted global pool + SE (1x1 convs) + gating for
# a block of `bn` batch elements resident in VMEM.
# ---------------------------------------------------------------------------
def _calayer_kernel(x_ref, wg_ref, bg_ref, w1t_ref, b1_ref, w2t_ref, b2_ref, o_ref):
    x = x_ref[...]                                                  # (bn, C, HWp)

    # Depthwise "global conv" == learned per-channel weighted global pool
    # (lane reduction -> XLU slot) + per-channel bias.
    pooled = jnp.sum(x * wg_ref[...], axis=-1) + bg_ref[...]        # (bn, C)

    # Squeeze/excite: two 1x1 convs as small (bn,C)@(C,Cf)/(bn,Cf)@(Cf,C)
    # matmuls (MXU), ReLU (VPU), sigmoid (EUP) -- all slack under the stream.
    hidden = jnp.maximum(
        jnp.dot(pooled, w1t_ref[...], preferred_element_type=jnp.float32)
        + b1_ref[...], 0.0)                                          # (bn, Cf)
    gate = jax.nn.sigmoid(
        jnp.dot(hidden, w2t_ref[...], preferred_element_type=jnp.float32)
        + b2_ref[...])                                               # (bn, C)

    # Per-channel gating of the streaming x tile (broadcast along lanes).
    o_ref[...] = (x * gate[:, :, None]).astype(o_ref.dtype)


# ---------------------------------------------------------------------------
# Two-pass fallback kernels (used only when the full (C, H*W) slab does not
# fit VMEM, or when forced for testing).  Pass 1: pool + SE -> gate (N, C, 1).
# Pass 2: apply the gate, spatially tiled.
# ---------------------------------------------------------------------------
def _pool_se_kernel(x_ref, wg_ref, bg_ref, w1_ref, b1_ref, w2_ref, b2_ref,
                    gate_ref, acc_ref):
    j = pl.program_id(1)

    @pl.when(j == 0)
    def _():
        acc_ref[...] = jnp.zeros_like(acc_ref)

    acc_ref[...] += jnp.sum(x_ref[0] * wg_ref[...], axis=-1, keepdims=True)  # (C,1)

    @pl.when(j == pl.num_programs(1) - 1)
    def _():
        pooled = acc_ref[...] + bg_ref[...]                                   # (C,1)
        hidden = jnp.maximum(
            jnp.dot(w1_ref[...], pooled, preferred_element_type=jnp.float32)
            + b1_ref[...], 0.0)                                               # (Cf,1)
        gate_ref[0] = jax.nn.sigmoid(
            jnp.dot(w2_ref[...], hidden, preferred_element_type=jnp.float32)
            + b2_ref[...])                                                    # (C,1)


def _gate_apply_kernel(gate_ref, x_ref, o_ref):
    o_ref[0] = (x_ref[0] * gate_ref[0]).astype(o_ref.dtype)


# ---------------------------------------------------------------------------
# Sizing helpers
# ---------------------------------------------------------------------------
def _round_up(v, m):
    return ((v + m - 1) // m) * m


def _vmem_capacity_bytes():
    # Generation-aware VMEM capacity (v5e/v6e: 128 MiB, v7x: 64 MiB per TC).
    try:
        return int(pltpu.get_tpu_info().vmem_capacity_bytes)
    except Exception:
        return 64 << 20  # conservative: assume the smallest generation (v7x)


def _param_bytes(c, cf, hw_p, single_buffer):
    wg_b = c * hw_p * 4
    small_b = (2 * c * cf + 2 * c + cf) * 4
    return (1 if single_buffer else 2) * wg_b + 2 * small_b


def _choose_bn(n, elem_tile_bytes, resident_bytes, vmem_cap,
               target_tile=4 << 20, max_tile=8 << 20, margin=4 << 20):
    """Batch elements per grid step.

    Priorities: (a) double-buffered in+out tiles + resident params + margin fit
    VMEM, (b) streamed tile <= ~8 MiB (HBM roofline plateau), (c) grid length
    even and >= 2 so v7x's two TensorCores split cleanly, (d) tile ~4 MiB.
    Returns None if even bn == 1 does not fit (caller uses two-pass fallback).
    """
    divisors = [d for d in range(1, n + 1) if n % d == 0]

    def fits(d):
        return 4 * d * elem_tile_bytes + resident_bytes + margin <= vmem_cap

    feasible = [d for d in divisors if fits(d) and d * elem_tile_bytes <= max_tile]
    if not feasible:
        feasible = [d for d in divisors if fits(d)]
    if not feasible:
        return None

    def score(d):
        g = n // d
        megacore = 2 if (g >= 2 and g % 2 == 0) else (1 if g >= 2 else 0)
        return (megacore, -abs(d * elem_tile_bytes - target_tile))

    return max(feasible, key=score)


# ---------------------------------------------------------------------------
# pallas_call builders
# ---------------------------------------------------------------------------
def _single_pass(x3, wg2, bg, w1, b1, w2, b2, bn, vmem_cap):
    n, c, hw_p = x3.shape
    cf = w1.shape[0]
    itemsize = jnp.dtype(x3.dtype).itemsize

    bg_r = bg.reshape(1, c).astype(jnp.float32)
    b1_r = b1.reshape(1, cf).astype(jnp.float32)
    b2_r = b2.reshape(1, cf if False else c).astype(jnp.float32)
    w1t = w1.T.astype(jnp.float32)   # (C, Cf)
    w2t = w2.T.astype(jnp.float32)   # (Cf, C)

    cost = pl.CostEstimate(
        flops=3 * n * c * hw_p + 4 * n * c * cf,
        transcendentals=n * c,
        bytes_accessed=2 * n * c * hw_p * itemsize + c * hw_p * 4,
    )

    def build(single_buffer_params):
        pm = dict(pipeline_mode=pl.Buffered(1)) if single_buffer_params else {}
        tile_bytes = bn * c * hw_p * itemsize
        need = (4 * tile_bytes
                + _param_bytes(c, cf, hw_p, single_buffer_params)
                + (4 << 20))
        vmem_limit = int(min(max(need, 16 << 20), vmem_cap))
        return pl.pallas_call(
            _calayer_kernel,
            out_shape=jax.ShapeDtypeStruct((n, c, hw_p), x3.dtype),
            grid_spec=pltpu.PrefetchScalarGridSpec(
                num_scalar_prefetch=0,
                grid=(n // bn,),
                in_specs=[
                    pl.BlockSpec((bn, c, hw_p), lambda i: (i, 0, 0)),   # x (streamed)
                    pl.BlockSpec((c, hw_p), lambda i: (0, 0), **pm),    # wg (resident)
                    pl.BlockSpec((1, c), lambda i: (0, 0), **pm),       # bg
                    pl.BlockSpec((c, cf), lambda i: (0, 0), **pm),      # w1^T
                    pl.BlockSpec((1, cf), lambda i: (0, 0), **pm),      # b1
                    pl.BlockSpec((cf, c), lambda i: (0, 0), **pm),      # w2^T
                    pl.BlockSpec((1, c), lambda i: (0, 0), **pm),       # b2
                ],
                out_specs=pl.BlockSpec((bn, c, hw_p), lambda i: (i, 0, 0)),
            ),
            compiler_params=pltpu.CompilerParams(
                dimension_semantics=("parallel",),   # megacore split on v7x
                vmem_limit_bytes=vmem_limit,
            ),
            cost_estimate=cost,
        )

    try:
        return build(True)(x3, wg2, bg_r, w1t, b1_r, w2t, b2_r)
    except Exception:
        # pl.Buffered(1) not honored on this jax/libtpu combination: fall back
        # to default double-buffered resident params (costs one extra wg tile).
        return build(False)(x3, wg2, bg_r, w1t, b1_r, w2t, b2_r)


def _two_pass(x3, wg2, bg, w1, b1, w2, b2, vmem_cap):
    """Spatially tiled fallback: pool+SE pass, then gating pass (1.5x HBM)."""
    n, c, hw_p = x3.shape
    cf = w1.shape[0]
    itemsize = jnp.dtype(x3.dtype).itemsize

    # Spatial tile: a multiple of 128 that divides hw_p, <= ~8 MiB and fitting
    # the double-buffered in+out budget.
    units = hw_p // 128
    budget = max(128 * c * itemsize, min(8 << 20, (vmem_cap - (8 << 20)) // 4))
    t_units = 1
    for d in range(1, units + 1):
        if units % d == 0 and d * 128 * c * itemsize <= budget:
            t_units = d
    t_hw = t_units * 128
    n_hw_tiles = hw_p // t_hw

    bg_c = bg.reshape(c, 1).astype(jnp.float32)
    b1_c = b1.reshape(cf, 1).astype(jnp.float32)
    b2_c = b2.reshape(c, 1).astype(jnp.float32)
    w1_f = w1.astype(jnp.float32)
    w2_f = w2.astype(jnp.float32)

    vmem_limit = int(min(max(4 * c * t_hw * itemsize + (8 << 20), 16 << 20), vmem_cap))

    gate = pl.pallas_call(
        _pool_se_kernel,
        out_shape=jax.ShapeDtypeStruct((n, c, 1), jnp.float32),
        grid_spec=pltpu.PrefetchScalarGridSpec(
            num_scalar_prefetch=0,
            grid=(n, n_hw_tiles),
            in_specs=[
                pl.BlockSpec((1, c, t_hw), lambda i, j: (i, 0, j)),   # x
                pl.BlockSpec((c, t_hw), lambda i, j: (0, j)),         # wg
                pl.BlockSpec((c, 1), lambda i, j: (0, 0)),            # bg
                pl.BlockSpec((cf, c), lambda i, j: (0, 0)),           # w1
                pl.BlockSpec((cf, 1), lambda i, j: (0, 0)),           # b1
                pl.BlockSpec((c, cf), lambda i, j: (0, 0)),           # w2
                pl.BlockSpec((c, 1), lambda i, j: (0, 0)),            # b2
            ],
            out_specs=pl.BlockSpec((1, c, 1), lambda i, j: (i, 0, 0)),
            scratch_shapes=[pltpu.VMEM((c, 1), jnp.float32)],
        ),
        compiler_params=pltpu.CompilerParams(
            dimension_semantics=("parallel", "arbitrary"),
            vmem_limit_bytes=vmem_limit,
        ),
    )(x3, wg2, bg_c, w1_f, b1_c, w2_f, b2_c)

    out3 = pl.pallas_call(
        _gate_apply_kernel,
        out_shape=jax.ShapeDtypeStruct((n, c, hw_p), x3.dtype),
        grid_spec=pltpu.PrefetchScalarGridSpec(
            num_scalar_prefetch=0,
            grid=(n, n_hw_tiles),
            in_specs=[
                pl.BlockSpec((1, c, 1), lambda i, j: (i, 0, 0)),      # gate
                pl.BlockSpec((1, c, t_hw), lambda i, j: (i, 0, j)),   # x
            ],
            out_specs=pl.BlockSpec((1, c, t_hw), lambda i, j: (i, 0, j)),
        ),
        compiler_params=pltpu.CompilerParams(
            dimension_semantics=("parallel", "parallel"),
            vmem_limit_bytes=vmem_limit,
        ),
    )(gate, x3)
    return out3


# ---------------------------------------------------------------------------
# Public wrapper
# ---------------------------------------------------------------------------
def calayer_forward(x, wg, bg, w1, b1, w2, b2, *, force_two_pass=False):
    """Fused CALayer forward.

    x  : (N, C, H, W) with (H, W) == imgsize of the depthwise conv.  Feed bf16
         from the producer to halve HBM traffic (the kernel is HBM-bound);
         pool/SE math stays f32 inside the kernel regardless of x's dtype.
    wg : (C, H, W)  depthwise global-conv weight (PyTorch (C, 1, H, W) squeezed)
    bg : (C,)       depthwise global-conv bias
    w1 : (C*factor, C), b1 : (C*factor,)   first 1x1 conv
    w2 : (C, C*factor), b2 : (C,)          second 1x1 conv
    """
    n, c, h, w = x.shape
    hw = h * w
    cf = w1.shape[0]
    itemsize = jnp.dtype(x.dtype).itemsize

    # Lane-dense layout: spatial axis last, padded to a multiple of 128 so
    # stores stay full-width `vst` (padded wg lanes are zero, so the pool and
    # the sliced-off output are unaffected).
    hw_p = max(_round_up(hw, 128), 128)
    x3 = x.reshape(n, c, hw)
    wg2 = wg.reshape(c, hw).astype(jnp.float32)
    if hw_p != hw:
        x3 = jnp.pad(x3, ((0, 0), (0, 0), (0, hw_p - hw)))
        wg2 = jnp.pad(wg2, ((0, 0), (0, hw_p - hw)))

    vmem_cap = int(_vmem_capacity_bytes() * 0.85)
    elem_tile_bytes = c * hw_p * itemsize
    bn = _choose_bn(n, elem_tile_bytes, _param_bytes(c, cf, hw_p, True), vmem_cap)

    if force_two_pass or bn is None:
        # Explicit fallback when the single-pass footprint exceeds VMEM
        # (important on v7x's 64 MiB) instead of silently clamping the limit.
        out3 = _two_pass(x3, wg2, bg, w1, b1, w2, b2, vmem_cap)
    else:
        out3 = _single_pass(x3, wg2, bg, w1, b1, w2, b2, bn, vmem_cap)

    if hw_p != hw:
        out3 = out3[:, :, :hw]
    return out3.reshape(n, c, h, w)


if __name__ == "__main__":
    key = jax.random.PRNGKey(0)
    n, c, imgsize, factor = 2, 4, 16, 6
    cf = c * factor

    k = jax.random.split(key, 7)
    x = jax.random.normal(k[0], (n, c, imgsize, imgsize), dtype=jnp.float32)

    # Deterministic stand-ins for the PyTorch conv parameters.
    wg = jax.random.normal(k[1], (c, imgsize, imgsize), dtype=jnp.float32) / (imgsize * imgsize)
    bg = jax.random.normal(k[2], (c,), dtype=jnp.float32) * 0.1
    w1 = jax.random.normal(k[3], (cf, c), dtype=jnp.float32) * (c ** -0.5)
    b1 = jax.random.normal(k[4], (cf,), dtype=jnp.float32) * 0.1
    w2 = jax.random.normal(k[5], (c, cf), dtype=jnp.float32) * (cf ** -0.5)
    b2 = jax.random.normal(k[6], (c,), dtype=jnp.float32) * 0.1

    out = calayer_forward(x, wg, bg, w1, b1, w2, b2)
    jax.block_until_ready(out)

    # Also exercise the spatially-tiled two-pass fallback path.
    out_tp = calayer_forward(x, wg, bg, w1, b1, w2, b2, force_two_pass=True)
    jax.block_until_ready(out_tp)

    # Pure-JAX reference (identical math to the PyTorch CALayer forward).
    pooled = jnp.einsum("nchw,chw->nc", x, wg) + bg
    hidden = jax.nn.relu(pooled @ w1.T + b1)
    gate = jax.nn.sigmoid(hidden @ w2.T + b2)
    ref = x * gate[:, :, None, None]

    assert jnp.allclose(out, ref, atol=1e-5, rtol=1e-5), "single-pass mismatch"
    assert jnp.allclose(out_tp, ref, atol=1e-5, rtol=1e-5), "two-pass mismatch"
    print("KERNEL_OK")
</pallas_src>

<mosaic_0001>
module attributes {stable_mosaic.version = 11 : i64} {
  func.func @_calayer_kernel(%arg0: i32, %arg1: memref<1x4x256xf32, #tpu.memory_space<vmem>>, %arg2: memref<4x256xf32, #tpu.memory_space<vmem>>, %arg3: memref<1x4xf32, #tpu.memory_space<vmem>>, %arg4: memref<4x24xf32, #tpu.memory_space<vmem>>, %arg5: memref<1x24xf32, #tpu.memory_space<vmem>>, %arg6: memref<24x4xf32, #tpu.memory_space<vmem>>, %arg7: memref<1x4xf32, #tpu.memory_space<vmem>>, %arg8: memref<1x4x256xf32, #tpu.memory_space<vmem>>) attributes {dimension_semantics = [#tpu.dimension_semantics<parallel>], iteration_bounds = array<i64: 2>, scalar_prefetch = 0 : i64, scratch_operands = 0 : i64, tpu.core_type = #tpu.core_type<tc>, window_params = [{transform_indices = @transform_0, window_bounds = array<i64: 1, 4, 256>}, {pipeline_mode = #tpu.pipeline_mode<synchronous>, transform_indices = @transform_1, window_bounds = array<i64: 4, 256>}, {pipeline_mode = #tpu.pipeline_mode<synchronous>, transform_indices = @transform_2, window_bounds = array<i64: 1, 4>}, {pipeline_mode = #tpu.pipeline_mode<synchronous>, transform_indices = @transform_3, window_bounds = array<i64: 4, 24>}, {pipeline_mode = #tpu.pipeline_mode<synchronous>, transform_indices = @transform_4, window_bounds = array<i64: 1, 24>}, {pipeline_mode = #tpu.pipeline_mode<synchronous>, transform_indices = @transform_5, window_bounds = array<i64: 24, 4>}, {pipeline_mode = #tpu.pipeline_mode<synchronous>, transform_indices = @transform_6, window_bounds = array<i64: 1, 4>}, {transform_indices = @transform_7, window_bounds = array<i64: 1, 4, 256>}]} {
    %c0 = arith.constant 0 : index
    %c0_0 = arith.constant 0 : index
    %c0_1 = arith.constant 0 : index
    %0 = vector.load %arg1[%c0, %c0_0, %c0_1] : memref<1x4x256xf32, #tpu.memory_space<vmem>>, vector<1x4x256xf32>
    %c0_2 = arith.constant 0 : index
    %c0_3 = arith.constant 0 : index
    %1 = vector.load %arg2[%c0_2, %c0_3] : memref<4x256xf32, #tpu.memory_space<vmem>>, vector<4x256xf32>
    %2 = vector.shape_cast %1 : vector<4x256xf32> to vector<1x4x256xf32>
    %3 = arith.mulf %0, %2 : vector<1x4x256xf32>
    %cst = arith.constant dense<0.000000e+00> : vector<1x4xf32>
    %4 = vector.multi_reduction <add>, %3, %cst [2] : vector<1x4x256xf32> to vector<1x4xf32>
    %c0_4 = arith.constant 0 : index
    %c0_5 = arith.constant 0 : index
    %5 = vector.load %arg3[%c0_4, %c0_5] : memref<1x4xf32, #tpu.memory_space<vmem>>, vector<1x4xf32>
    %6 = arith.addf %4, %5 : vector<1x4xf32>
    %c0_6 = arith.constant 0 : index
    %c0_7 = arith.constant 0 : index
    %7 = vector.load %arg4[%c0_6, %c0_7] : memref<4x24xf32, #tpu.memory_space<vmem>>, vector<4x24xf32>
    %cst_8 = arith.constant dense<0.000000e+00> : vector<1x24xf32>
    %8 = tpu.matmul %6, %7, %cst_8 {dimension_numbers = #tpu.dot_dimension_numbers<[1], [0], [0], [1], [0, 0, 1, 1], [], []>} : vector<1x4xf32>, vector<4x24xf32>, vector<1x24xf32> -> vector<1x24xf32>
    %c0_9 = arith.constant 0 : index
    %c0_10 = arith.constant 0 : index
    %9 = vector.load %arg5[%c0_9, %c0_10] : memref<1x24xf32, #tpu.memory_space<vmem>>, vector<1x24xf32>
    %10 = arith.addf %8, %9 : vector<1x24xf32>
    %cst_11 = arith.constant 0.000000e+00 : f32
    %11 = vector.broadcast %cst_11 : f32 to vector<1x24xf32>
    %12 = arith.maximumf %10, %11 : vector<1x24xf32>
    %c0_12 = arith.constant 0 : index
    %c0_13 = arith.constant 0 : index
    %13 = vector.load %arg6[%c0_12, %c0_13] : memref<24x4xf32, #tpu.memory_space<vmem>>, vector<24x4xf32>
    %cst_14 = arith.constant dense<0.000000e+00> : vector<1x4xf32>
    %14 = tpu.matmul %12, %13, %cst_14 {dimension_numbers = #tpu.dot_dimension_numbers<[1], [0], [0], [1], [0, 0, 1, 1], [], []>} : vector<1x24xf32>, vector<24x4xf32>, vector<1x4xf32> -> vector<1x4xf32>
    %c0_15 = arith.constant 0 : index
    %c0_16 = arith.constant 0 : index
    %15 = vector.load %arg7[%c0_15, %c0_16] : memref<1x4xf32, #tpu.memory_space<vmem>>, vector<1x4xf32>
    %16 = arith.addf %14, %15 : vector<1x4xf32>
    %17 = arith.negf %16 : vector<1x4xf32>
    %18 = math.exp %17 : vector<1x4xf32>
    %cst_17 = arith.constant 1.000000e+00 : f32
    %19 = vector.broadcast %cst_17 : f32 to vector<1x4xf32>
    %20 = arith.addf %19, %18 : vector<1x4xf32>
    %21 = arith.divf %19, %20 : vector<1x4xf32>
    %22 = vector.shape_cast %21 : vector<1x4xf32> to vector<1x4x1xf32>
    %23 = vector.broadcast %22 : vector<1x4x1xf32> to vector<1x4x256xf32>
    %24 = arith.mulf %0, %23 : vector<1x4x256xf32>
    %c0_18 = arith.constant 0 : index
    %c0_19 = arith.constant 0 : index
    %c0_20 = arith.constant 0 : index
    %25 = vector.load %arg8[%c0_18, %c0_19, %c0_20] : memref<1x4x256xf32, #tpu.memory_space<vmem>>, vector<1x4x256xf32>
    tpu.vector_store %arg8[%c0_18, %c0_19, %c0_20], %24 {strides = array<i32>} : memref<1x4x256xf32, #tpu.memory_space<vmem>>, vector<1x4x256xf32>,
    return
  }
  func.func @transform_0(%arg0: i32) -> (i32, i32, i32) {
    %c0_i32 = arith.constant 0 : i32
    %c0_i32_0 = arith.constant 0 : i32
    %c0_i32_1 = arith.constant 0 : i32
    return %arg0, %c0_i32, %c0_i32_0 : i32, i32, i32
  }
  func.func @transform_1(%arg0: i32) -> (i32, i32) {
    %c0_i32 = arith.constant 0 : i32
    %c0_i32_0 = arith.constant 0 : i32
    %c0_i32_1 = arith.constant 0 : i32
    return %c0_i32, %c0_i32_0 : i32, i32
  }
  func.func @transform_2(%arg0: i32) -> (i32, i32) {
    %c0_i32 = arith.constant 0 : i32
    %c0_i32_0 = arith.constant 0 : i32
    %c0_i32_1 = arith.constant 0 : i32
    return %c0_i32, %c0_i32_0 : i32, i32
  }
  func.func @transform_3(%arg0: i32) -> (i32, i32) {
    %c0_i32 = arith.constant 0 : i32
    %c0_i32_0 = arith.constant 0 : i32
    %c0_i32_1 = arith.constant 0 : i32
    return %c0_i32, %c0_i32_0 : i32, i32
  }
  func.func @transform_4(%arg0: i32) -> (i32, i32) {
    %c0_i32 = arith.constant 0 : i32
    %c0_i32_0 = arith.constant 0 : i32
    %c0_i32_1 = arith.constant 0 : i32
    return %c0_i32, %c0_i32_0 : i32, i32
  }
  func.func @transform_5(%arg0: i32) -> (i32, i32) {
    %c0_i32 = arith.constant 0 : i32
    %c0_i32_0 = arith.constant 0 : i32
    %c0_i32_1 = arith.constant 0 : i32
    return %c0_i32, %c0_i32_0 : i32, i32
  }
  func.func @transform_6(%arg0: i32) -> (i32, i32) {
    %c0_i32 = arith.constant 0 : i32
    %c0_i32_0 = arith.constant 0 : i32
    %c0_i32_1 = arith.constant 0 : i32
    return %c0_i32, %c0_i32_0 : i32, i32
  }
  func.func @transform_7(%arg0: i32) -> (i32, i32, i32) {
    %c0_i32 = arith.constant 0 : i32
    %c0_i32_0 = arith.constant 0 : i32
    %c0_i32_1 = arith.constant 0 : i32
    return %arg0, %c0_i32, %c0_i32_0 : i32, i32, i32
  }
}

module attributes {stable_mosaic.version = 11 : i64} {
  func.func @_calayer_kernel(%arg0: i32, %arg1: memref<1x4x256xf32, #tpu.memory_space<vmem>>, %arg2: memref<4x256xf32, #tpu.memory_space<vmem>>, %arg3: memref<1x4xf32, #tpu.memory_space<vmem>>, %arg4: memref<4x24xf32, #tpu.memory_space<vmem>>, %arg5: memref<1x24xf32, #tpu.memory_space<vmem>>, %arg6: memref<24x4xf32, #tpu.memory_space<vmem>>, %arg7: memref<1x4xf32, #tpu.memory_space<vmem>>, %arg8: memref<1x4x256xf32, #tpu.memory_space<vmem>>) attributes {dimension_semantics = [#tpu.dimension_semantics<parallel>], iteration_bounds = array<i64: 2>, scalar_prefetch = 0 : i64, scratch_operands = 0 : i64, tpu.core_type = #tpu.core_type<tc>, window_params = [{transform_indices = @transform_0, window_bounds = array<i64: 1, 4, 256>}, {pipeline_mode = #tpu.pipeline_mode<synchronous>, transform_indices = @transform_1, window_bounds = array<i64: 4, 256>}, {pipeline_mode = #tpu.pipeline_mode<synchronous>, transform_indices = @transform_2, window_bounds = array<i64: 1, 4>}, {pipeline_mode = #tpu.pipeline_mode<synchronous>, transform_indices = @transform_3, window_bounds = array<i64: 4, 24>}, {pipeline_mode = #tpu.pipeline_mode<synchronous>, transform_indices = @transform_4, window_bounds = array<i64: 1, 24>}, {pipeline_mode = #tpu.pipeline_mode<synchronous>, transform_indices = @transform_5, window_bounds = array<i64: 24, 4>}, {pipeline_mode = #tpu.pipeline_mode<synchronous>, transform_indices = @transform_6, window_bounds = array<i64: 1, 4>}, {transform_indices = @transform_7, window_bounds = array<i64: 1, 4, 256>}]} {
    %c0 = arith.constant 0 : index
    %c0_0 = arith.constant 0 : index
    %c0_1 = arith.constant 0 : index
    %0 = vector.load %arg1[%c0, %c0_0, %c0_1] : memref<1x4x256xf32, #tpu.memory_space<vmem>>, vector<1x4x256xf32>
    %c0_2 = arith.constant 0 : index
    %c0_3 = arith.constant 0 : index
    %1 = vector.load %arg2[%c0_2, %c0_3] : memref<4x256xf32, #tpu.memory_space<vmem>>, vector<4x256xf32>
    %2 = vector.shape_cast %1 : vector<4x256xf32> to vector<1x4x256xf32>
    %3 = arith.mulf %0, %2 : vector<1x4x256xf32>
    %cst = arith.constant dense<0.000000e+00> : vector<1x4xf32>
    %4 = vector.multi_reduction <add>, %3, %cst [2] : vector<1x4x256xf32> to vector<1x4xf32>
    %c0_4 = arith.constant 0 : index
    %c0_5 = arith.constant 0 : index
    %5 = vector.load %arg3[%c0_4, %c0_5] : memref<1x4xf32, #tpu.memory_space<vmem>>, vector<1x4xf32>
    %6 = arith.addf %4, %5 : vector<1x4xf32>
    %c0_6 = arith.constant 0 : index
    %c0_7 = arith.constant 0 : index
    %7 = vector.load %arg4[%c0_6, %c0_7] : memref<4x24xf32, #tpu.memory_space<vmem>>, vector<4x24xf32>
    %cst_8 = arith.constant dense<0.000000e+00> : vector<1x24xf32>
    %8 = tpu.matmul %6, %7, %cst_8 {dimension_numbers = #tpu.dot_dimension_numbers<[1], [0], [0], [1], [0, 0, 1, 1], [], []>} : vector<1x4xf32>, vector<4x24xf32>, vector<1x24xf32> -> vector<1x24xf32>
    %c0_9 = arith.constant 0 : index
    %c0_10 = arith.constant 0 : index
    %9 = vector.load %arg5[%c0_9, %c0_10] : memref<1x24xf32, #tpu.memory_space<vmem>>, vector<1x24xf32>
    %10 = arith.addf %8, %9 : vector<1x24xf32>
    %cst_11 = arith.constant 0.000000e+00 : f32
    %11 = vector.broadcast %cst_11 : f32 to vector<1x24xf32>
    %12 = arith.maximumf %10, %11 : vector<1x24xf32>
    %c0_12 = arith.constant 0 : index
    %c0_13 = arith.constant 0 : index
    %13 = vector.load %arg6[%c0_12, %c0_13] : memref<24x4xf32, #tpu.memory_space<vmem>>, vector<24x4xf32>
    %cst_14 = arith.constant dense<0.000000e+00> : vector<1x4xf32>
    %14 = tpu.matmul %12, %13, %cst_14 {dimension_numbers = #tpu.dot_dimension_numbers<[1], [0], [0], [1], [0, 0, 1, 1], [], []>} : vector<1x24xf32>, vector<24x4xf32>, vector<1x4xf32> -> vector<1x4xf32>
    %c0_15 = arith.constant 0 : index
    %c0_16 = arith.constant 0 : index
    %15 = vector.load %arg7[%c0_15, %c0_16] : memref<1x4xf32, #tpu.memory_space<vmem>>, vector<1x4xf32>
    %16 = arith.addf %14, %15 : vector<1x4xf32>
    %17 = arith.negf %16 : vector<1x4xf32>
    %18 = math.exp %17 : vector<1x4xf32>
    %cst_17 = arith.constant 1.000000e+00 : f32
    %19 = vector.broadcast %cst_17 : f32 to vector<1x4xf32>
    %20 = arith.addf %19, %18 : vector<1x4xf32>
    %21 = arith.divf %19, %20 : vector<1x4xf32>
    %22 = vector.shape_cast %21 : vector<1x4xf32> to vector<1x4x1xf32>
    %23 = vector.broadcast %22 : vector<1x4x1xf32> to vector<1x4x256xf32>
    %24 = arith.mulf %0, %23 : vector<1x4x256xf32>
    %c0_18 = arith.constant 0 : index
    %c0_19 = arith.constant 0 : index
    %c0_20 = arith.constant 0 : index
    %25 = vector.load %arg8[%c0_18, %c0_19, %c0_20] : memref<1x4x256xf32, #tpu.memory_space<vmem>>, vector<1x4x256xf32>
    tpu.vector_store %arg8[%c0_18, %c0_19, %c0_20], %24 {strides = array<i32>} : memref<1x4x256xf32, #tpu.memory_space<vmem>>, vector<1x4x256xf32>,
    return
  }
  func.func @transform_0(%arg0: i32) -> (i32, i32, i32) {
    %c0_i32 = arith.constant 0 : i32
    %c0_i32_0 = arith.constant 0 : i32
    %c0_i32_1 = arith.constant 0 : i32
    return %arg0, %c0_i32, %c0_i32_0 : i32, i32, i32
  }
  func.func @transform_1(%arg0: i32) -> (i32, i32) {
    %c0_i32 = arith.constant 0 : i32
    %c0_i32_0 = arith.constant 0 : i32
    %c0_i32_1 = arith.constant 0 : i32
    return %c0_i32, %c0_i32_0 : i32, i32
  }
  func.func @transform_2(%arg0: i32) -> (i32, i32) {
    %c0_i32 = arith.constant 0 : i32
    %c0_i32_0 = arith.constant 0 : i32
    %c0_i32_1 = arith.constant 0 : i32
    return %c0_i32, %c0_i32_0 : i32, i32
  }
  func.func @transform_3(%arg0: i32) -> (i32, i32) {
    %c0_i32 = arith.constant 0 : i32
    %c0_i32_0 = arith.constant 0 : i32
    %c0_i32_1 = arith.constant 0 : i32
    return %c0_i32, %c0_i32_0 : i32, i32
  }
  func.func @transform_4(%arg0: i32) -> (i32, i32) {
    %c0_i32 = arith.constant 0 : i32
    %c0_i32_0 = arith.constant 0 : i32
    %c0_i32_1 = arith.constant 0 : i32
    return %c0_i32, %c0_i32_0 : i32, i32
  }
  func.func @transform_5(%arg0: i32) -> (i32, i32) {
    %c0_i32 = arith.constant 0 : i32
    %c0_i32_0 = arith.constant 0 : i32
    %c0_i32_1 = arith.constant 0 : i32
    return %c0_i32, %c0_i32_0 : i32, i32
  }
  func.func @transform_6(%arg0: i32) -> (i32, i32) {
    %c0_i32 = arith.constant 0 : i32
    %c0_i32_0 = arith.constant 0 : i32
    %c0_i32_1 = arith.constant 0 : i32
    return %c0_i32, %c0_i32_0 : i32, i32
  }
  func.func @transform_7(%arg0: i32) -> (i32, i32, i32) {
    %c0_i32 = arith.constant 0 : i32
    %c0_i32_0 = arith.constant 0 : i32
    %c0_i32_1 = arith.constant 0 : i32
    return %arg0, %c0_i32, %c0_i32_0 : i32, i32, i32
  }
}

</mosaic_0001>

<llo_original>
// kernel: tpu_custom_call.1
$region0: #{tpu_custom_call.1}
  #allocation0 [shape = 'u32[]', space=smem, size = 0x4, offset = 0x4, fixed_abs, tag = 'smem constant byte address 0x4 - core index']
  #allocation1 [shape = 'u32[72,128]{1,0:T(1,128)}', space=vmem, size = 0x9000, scoped, tag = 'internal scratch']
  %s0 = inlined_call_operand.vmem [shape: f32[2,4,256], index: 0, kind: input, shape index: {}]
  %s1 = inlined_call_operand.vmem [shape: f32[4,256], index: 1, kind: input, shape index: {}]
  %s2 = inlined_call_operand.hbm [shape: f32[1,4], index: 2, kind: input, shape index: {}]
  %s3 = inlined_call_operand.vmem [shape: f32[4,24], index: 3, kind: input, shape index: {}]
  %s4 = inlined_call_operand.hbm [shape: f32[1,24], index: 4, kind: input, shape index: {}]
  %s5 = inlined_call_operand.vmem [shape: f32[24,4], index: 5, kind: input, shape index: {}]
  %s6 = inlined_call_operand.vmem [shape: f32[1,4], index: 6, kind: input, shape index: {}]
  %s7 = inlined_call_operand.hbm [shape: f32[2,4,256], index: 7, kind: output, shape index: {}]
  %s8 = sld [smem:[#allocation0]]
  $region69: #{tpu_custom_call.1} parent=0
    _
  %s10 = ssub.s32 1, %s8
  %s11 = scalar_select 0, %s10, %s8
  $region1: #{tpu_custom_call.1} parent=0
    #allocation2 [shape = 'u8[512]{0}', space=vmem, size = 0x400, scoped, tag = 'input window, operand 2, single buffered']
    #allocation3 [shape = 's32[2]{0}', space=sflag, size = 0x8, scoped, tag = 'scoped memory for tpu_custom_call.1']
    #allocation4 [shape = 's32[2]{0}', space=sflag, size = 0x8, scoped, tag = 'scoped memory for tpu_custom_call.1']
    #allocation5 [shape = 'u8[512]{0}', space=vmem, size = 0x400, scoped, tag = 'input window, operand 4, single buffered']
    #allocation6 [shape = 's32[1]{0}', space=sflag, size = 0x4, scoped, tag = 'scoped memory for tpu_custom_call.1']
    #allocation7 [shape = 'u8[8192]{0}', space=vmem, size = 0x2000, scoped, tag = 'output window, operand 0']
    %12 = vsyncpa [#allocation3], 0
    %13 = vsyncpa [#allocation6], 0
    %14 = vsyncpa [#allocation4], 0
    %s15 = scalar_lea.sflag [#allocation4], 1
    %16 = vsyncpa %s15, 0
    loop: start=0, step=1, limit=4
    $region2: #{tpu_custom_call.1} parent=1 // loop_pre_header
      _
    $region3: #{tpu_custom_call.1} parent=1 // loop_header
      %s18 = sphi 0, %s22
      %p19 = scmp.ge.s32.totalorder %s18, 4
      %s28 = sphi 0, %s30
      %s31 = sphi 0, %s28
      %s32 = sphi 0, %s31
      %s48 = sphi 0, %s32
      %s52 = sphi 0, %s52
      %s54 = sphi 0, %s52
      %s55 = sphi 0, %s54
      %s69 = sphi 0, %s55
      %s73 = sphi 0, %s73
      %s75 = sphi 0, %s73
      %s76 = sphi 0, %s75
      %s90 = sphi 0, %s76
      %s94 = sphi 0, %s94
      %s96 = sphi 0, %s94
      %s97 = sphi 0, %s96
      %s111 = sphi 0, %s97
      %s115 = sphi 0, %s115
      %s117 = sphi 0, %s115
      %s118 = sphi 0, %s117
      %s132 = sphi 0, %s118
      %s136 = sphi 0, %s136
      %s138 = sphi 0, %s136
      %s139 = sphi 0, %s138
      %s153 = sphi 0, %s139
      %s157 = sphi 0, %s157
      %s159 = sphi 0, %s157
      %s160 = sphi 0, %s159
      %s174 = sphi 0, %s160
      %s180 = sphi 0, %s182
      %s183 = sphi 0, %s180
      %s184 = sphi 0, %s183
      %s200 = sphi 0, %s184
    $region4: #{tpu_custom_call.1} parent=1 // loop_header_branch
      %21 = sbr.rel (%p19) target = $region8
    $region5: #{tpu_custom_call.1} parent=1 // loop_body
      %s23 = ssub.s32 %s18, 1
      %s24 = ssub.s32 %s18, 2
      %s25 = sadd.s32 %s18, 1
      %s26 = ssub.s32 %s18, %s25
      %p27 = scmp.eq.s32.totalorder %s26, 0
      %s29 = sadd.s32 %s28, 1
      %s30 = scalar_select %p27, %s28, %s29
      %p33 = pneg %p27
      %p34 = scmp.eq.s32.totalorder %s18, 1
      %p35 = por %p33, %p34
      %p36 = scmp.ne.s32.totalorder %s28, %s31
      %p37 = scmp.eq.s32.totalorder %s18, 0
      %p38 = por %p36, %p37
      %p39 = scmp.ne.s32.totalorder %s28, %s31
      %p40 = scmp.eq.s32.totalorder %s23, 1
      %p41 = por %p39, %p40
      %p42 = scmp.ne.s32.totalorder %s31, %s32
      %p43 = scmp.eq.s32.totalorder %s23, 0
      %p44 = por %p42, %p43
      %p45 = scmp.ne.s32.totalorder %s31, %s32
      %p46 = scmp.eq.s32.totalorder %s24, 1
      %p47 = por %p45, %p46
      %p49 = scmp.ne.s32.totalorder %s32, %s48
      %p50 = scmp.eq.s32.totalorder %s24, 0
      %p51 = por %p49, %p50
      %s53 = sadd.s32 %s52, 1
      %p56 = scmp.eq.s32.totalorder %s18, 1
      %p57 = scmp.ne.s32.totalorder %s52, %s54
      %p58 = scmp.eq.s32.totalorder %s18, 0
      %p59 = por %p57, %p58
      %p60 = scmp.ne.s32.totalorder %s52, %s54
      %p61 = scmp.eq.s32.totalorder %s23, 1
      %p62 = por %p60, %p61
      %p63 = scmp.ne.s32.totalorder %s54, %s55
      %p64 = scmp.eq.s32.totalorder %s23, 0
      %p65 = por %p63, %p64
      %p66 = scmp.ne.s32.totalorder %s54, %s55
      %p67 = scmp.eq.s32.totalorder %s24, 1
      %p68 = por %p66, %p67
      %p70 = scmp.ne.s32.totalorder %s55, %s69
      %p71 = scmp.eq.s32.totalorder %s24, 0
      %p72 = por %p70, %p71
      %s74 = sadd.s32 %s73, 1
      %p77 = scmp.eq.s32.totalorder %s18, 1
      %p78 = scmp.ne.s32.totalorder %s73, %s75
      %p79 = scmp.eq.s32.totalorder %s18, 0
      %p80 = por %p78, %p79
      %p81 = scmp.ne.s32.totalorder %s73, %s75
      %p82 = scmp.eq.s32.totalorder %s23, 1
      %p83 = por %p81, %p82
      %p84 = scmp.ne.s32.totalorder %s75, %s76
      %p85 = scmp.eq.s32.totalorder %s23, 0
      %p86 = por %p84, %p85
      %p87 = scmp.ne.s32.totalorder %s75, %s76
      %p88 = scmp.eq.s32.totalorder %s24, 1
      %p89 = por %p87, %p88
      %p91 = scmp.ne.s32.totalorder %s76, %s90
      %p92 = scmp.eq.s32.totalorder %s24, 0
      %p93 = por %p91, %p92
      %s95 = sadd.s32 %s94, 1
      %p98 = scmp.eq.s32.totalorder %s18, 1
      %p99 = scmp.ne.s32.totalorder %s94, %s96
      %p100 = scmp.eq.s32.totalorder %s18, 0
      %p101 = por %p99, %p100
      %p102 = scmp.ne.s32.totalorder %s94, %s96
      %p103 = scmp.eq.s32.totalorder %s23, 1
      %p104 = por %p102, %p103
      %p105 = scmp.ne.s32.totalorder %s96, %s97
      %p106 = scmp.eq.s32.totalorder %s23, 0
      %p107 = por %p105, %p106
      %p108 = scmp.ne.s32.totalorder %s96, %s97
      %p109 = scmp.eq.s32.totalorder %s24, 1
      %p110 = por %p108, %p109
      %p112 = scmp.ne.s32.totalorder %s97, %s111
      %p113 = scmp.eq.s32.totalorder %s24, 0
      %p114 = por %p112, %p113
      %s116 = sadd.s32 %s115, 1
      %p119 = scmp.eq.s32.totalorder %s18, 1
      %p120 = scmp.ne.s32.totalorder %s115, %s117
      %p121 = scmp.eq.s32.totalorder %s18, 0
      %p122 = por %p120, %p121
      %p123 = scmp.ne.s32.totalorder %s115, %s117
      %p124 = scmp.eq.s32.totalorder %s23, 1
      %p125 = por %p123, %p124
      %p126 = scmp.ne.s32.totalorder %s117, %s118
      %p127 = scmp.eq.s32.totalorder %s23, 0
      %p128 = por %p126, %p127
      %p129 = scmp.ne.s32.totalorder %s117, %s118
      %p130 = scmp.eq.s32.totalorder %s24, 1
      %p131 = por %p129, %p130
      %p133 = scmp.ne.s32.totalorder %s118, %s132
      %p134 = scmp.eq.s32.totalorder %s24, 0
      %p135 = por %p133, %p134
      %s137 = sadd.s32 %s136, 1
      %p140 = scmp.eq.s32.totalorder %s18, 1
      %p141 = scmp.ne.s32.totalorder %s136, %s138
      %p142 = scmp.eq.s32.totalorder %s18, 0
      %p143 = por %p141, %p142
      %p144 = scmp.ne.s32.totalorder %s136, %s138
      %p145 = scmp.eq.s32.totalorder %s23, 1
      %p146 = por %p144, %p145
      %p147 = scmp.ne.s32.totalorder %s138, %s139
      %p148 = scmp.eq.s32.totalorder %s23, 0
      %p149 = por %p147, %p148
      %p150 = scmp.ne.s32.totalorder %s138, %s139
      %p151 = scmp.eq.s32.totalorder %s24, 1
      %p152 = por %p150, %p151
      %p154 = scmp.ne.s32.totalorder %s139, %s153
      %p155 = scmp.eq.s32.totalorder %s24, 0
      %p156 = por %p154, %p155
      %s158 = sadd.s32 %s157, 1
      %p161 = scmp.eq.s32.totalorder %s18, 1
      %p162 = scmp.ne.s32.totalorder %s157, %s159
      %p163 = scmp.eq.s32.totalorder %s18, 0
      %p164 = por %p162, %p163
      %p165 = scmp.ne.s32.totalorder %s157, %s159
      %p166 = scmp.eq.s32.totalorder %s23, 1
      %p167 = por %p165, %p166
      %p168 = scmp.ne.s32.totalorder %s159, %s160
      %p169 = scmp.eq.s32.totalorder %s23, 0
      %p170 = por %p168, %p169
      %p171 = scmp.ne.s32.totalorder %s159, %s160
      %p172 = scmp.eq.s32.totalorder %s24, 1
      %p173 = por %p171, %p172
      %p175 = scmp.ne.s32.totalorder %s160, %s174
      %p176 = scmp.eq.s32.totalorder %s24, 0
      %p177 = por %p175, %p176
      %s178 = ssub.s32 %s18, %s25
      %p179 = scmp.eq.s32.totalorder %s178, 0
      %s181 = sadd.s32 %s180, 1
      %s182 = scalar_select %p179, %s180, %s181
      %p185 = pneg %p179
      %p186 = scmp.eq.s32.totalorder %s18, 1
      %p187 = por %p185, %p186
      %p188 = scmp.ne.s32.totalorder %s180, %s183
      %p189 = scmp.eq.s32.totalorder %s18, 0
      %p190 = por %p188, %p189
      %p191 = scmp.ne.s32.totalorder %s180, %s183
      %p192 = scmp.eq.s32.totalorder %s23, 1
      %p193 = por %p191, %p192
      %p194 = scmp.ne.s32.totalorder %s183, %s184
      %p195 = scmp.eq.s32.totalorder %s23, 0
      %p196 = por %p194, %p195
      %p197 = scmp.ne.s32.totalorder %s183, %s184
      %p198 = scmp.eq.s32.totalorder %s24, 1
      %p199 = por %p197, %p198
      %p201 = scmp.ne.s32.totalorder %s184, %s200
      %p202 = scmp.eq.s32.totalorder %s24, 0
      %p203 = por %p201, %p202
      %p204 = scmp.le.s32.totalorder 1, %s18
      %p205 = scmp.lt.s32.totalorder %s18, 3
      %p206 = pnand %p204, %p205
      %p207 = pneg %p206
      // Predicated region
      $region9: #{tpu_custom_call.1} parent=5 // pred_check
        _
      $region10: #{tpu_custom_call.1} parent=5 // pred_check_branch
        %209 = sbr.rel (%p206) target = $region12
      $region11: #{tpu_custom_call.1} parent=5 // pred_region
        %s210 = ssub.s32 %s18, 1
        // Predicated region
        $region13: #{tpu_custom_call.1} parent=11 // pred_check
          %p211 = pneg %p65
        $region14: #{tpu_custom_call.1} parent=11 // pred_check_branch
          %213 = sbr.rel (%p211) target = $region16
        $region15: #{tpu_custom_call.1} parent=11 // pred_region
          _
        $region16: #{tpu_custom_call.1} parent=11 // pred_fallthru
          _
        // Predicated region
        $region17: #{tpu_custom_call.1} parent=11 // pred_check
          %p214 = pneg %p86
        $region18: #{tpu_custom_call.1} parent=11 // pred_check_branch
          %216 = sbr.rel (%p214) target = $region20
        $region19: #{tpu_custom_call.1} parent=11 // pred_region
          %218 = vsyncadd [#allocation3], 0
          %s220 = sshll.u32 %s2, 4
          %s221 = int_to_ptr.hbm [resolvable:$true] %s220
          %s222 = sshll.u32 [#allocation2], 4
          %s223 = int_to_ptr.vmem [resolvable:$true] %s222
          %225 = dma.hbm_to_vmem [thread:$0]  %s221, 16, %s223, [#allocation3]
        $region20: #{tpu_custom_call.1} parent=11 // pred_fallthru
          _
        // Predicated region
        $region21: #{tpu_custom_call.1} parent=11 // pred_check
          %p226 = pneg %p107
        $region22: #{tpu_custom_call.1} parent=11 // pred_check_branch
          %228 = sbr.rel (%p226) target = $region24
        $region23: #{tpu_custom_call.1} parent=11 // pred_region
          _
        $region24: #{tpu_custom_call.1} parent=11 // pred_fallthru
          _
        // Predicated region
        $region25: #{tpu_custom_call.1} parent=11 // pred_check
          %p229 = pneg %p128
        $region26: #{tpu_custom_call.1} parent=11 // pred_check_branch
          %231 = sbr.rel (%p229) target = $region28
        $region27: #{tpu_custom_call.1} parent=11 // pred_region
          %233 = vsyncadd [#allocation6], 0
          %s235 = sshll.u32 %s4, 4
          %s236 = int_to_ptr.hbm [resolvable:$true] %s235
          %s237 = sshll.u32 [#allocation5], 4
          %s238 = int_to_ptr.vmem [resolvable:$true] %s237
          %240 = dma.hbm_to_vmem [thread:$0]  %s236, 16, %s238, [#allocation6]
        $region28: #{tpu_custom_call.1} parent=11 // pred_fallthru
          _
        // Predicated region
        $region29: #{tpu_custom_call.1} parent=11 // pred_check
          %p241 = pneg %p149
        $region30: #{tpu_custom_call.1} parent=11 // pred_check_branch
          %243 = sbr.rel (%p241) target = $region32
        $region31: #{tpu_custom_call.1} parent=11 // pred_region
          _
        $region32: #{tpu_custom_call.1} parent=11 // pred_fallthru
          _
        // Predicated region
        $region33: #{tpu_custom_call.1} parent=11 // pred_check
          %p244 = pneg %p170
        $region34: #{tpu_custom_call.1} parent=11 // pred_check_branch
          %246 = sbr.rel (%p244) target = $region36
        $region35: #{tpu_custom_call.1} parent=11 // pred_region
          _
        $region36: #{tpu_custom_call.1} parent=11 // pred_fallthru
          _
      $region12: #{tpu_custom_call.1} parent=5 // pred_fallthru
        _
      %p247 = scmp.lt.s32.totalorder %s18, 2
      // Predicated region
      $region37: #{tpu_custom_call.1} parent=5 // pred_check
        %p248 = pneg %p247
      $region38: #{tpu_custom_call.1} parent=5 // pred_check_branch
        %250 = sbr.rel (%p248) target = $region40
      $region39: #{tpu_custom_call.1} parent=5 // pred_region
        // Predicated region
        $region41: #{tpu_custom_call.1} parent=39 // pred_check
          %p251 = pneg %p38
        $region42: #{tpu_custom_call.1} parent=39 // pred_check_branch
          %253 = sbr.rel (%p251) target = $region44
        $region43: #{tpu_custom_call.1} parent=39 // pred_region
          %p254 = scmp.lt.s32.totalorder %s18, 1
          %s255 = scalar_select %p254, %s18, 1
          %s256 = smul.addr %s255, 2
          %s257 = smul.addr %s256, 4
          %s258 = scalar_lea.vmem %s0, %s257
        $region44: #{tpu_custom_call.1} parent=39 // pred_fallthru
          _
      $region40: #{tpu_custom_call.1} parent=5 // pred_fallthru
        _
      %p259 = scmp.le.s32.totalorder 1, %s18
      %p260 = scmp.lt.s32.totalorder %s18, 3
      %p261 = pnand %p259, %p260
      %p262 = pneg %p261
      // Predicated region
      $region45: #{tpu_custom_call.1} parent=5 // pred_check
        _
      $region46: #{tpu_custom_call.1} parent=5 // pred_check_branch
        %264 = sbr.rel (%p261) target = $region48
      $region47: #{tpu_custom_call.1} parent=5 // pred_region
        %s265 = ssub.s32 %s18, 1
        // Predicated region
        $region49: #{tpu_custom_call.1} parent=47 // pred_check
          %p266 = pneg %p86
        $region50: #{tpu_custom_call.1} parent=47 // pred_check_branch
          %268 = sbr.rel (%p266) target = $region52
        $region51: #{tpu_custom_call.1} parent=47 // pred_region
          %270 = dma.done [#allocation3], 16
        $region52: #{tpu_custom_call.1} parent=47 // pred_fallthru
          _
        // Predicated region
        $region53: #{tpu_custom_call.1} parent=47 // pred_check
          %p271 = pneg %p128
        $region54: #{tpu_custom_call.1} parent=47 // pred_check_branch
          %273 = sbr.rel (%p271) target = $region56
        $region55: #{tpu_custom_call.1} parent=47 // pred_region
          %275 = dma.done [#allocation6], 16
        $region56: #{tpu_custom_call.1} parent=47 // pred_fallthru
          _
        %p276 = scmp.lt.s32.totalorder %s23, 1
        %s277 = scalar_select %p276, %s23, 1
        %s278 = smul.addr %s277, 2
        %s279 = smul.addr %s278, 4
        %s280 = scalar_lea.vmem %s0, %s279
        %p281 = pneg %p44
        %p282 = pneg %p41
        %p283 = pneg %p65
        %p284 = pneg %p62
        %p285 = pneg %p86
        %p286 = pneg %p83
        %p287 = pneg %p107
        %p288 = pneg %p104
        %p289 = pneg %p128
        %p290 = pneg %p125
        %p291 = pneg %p149
        %p292 = pneg %p146
        %p293 = pneg %p170
        %p294 = pneg %p167
        %p295 = pneg %p196
        %p296 = pneg %p193
        %s297 = sand.u32 %s183, 1
        %s298 = scalar_lea.sflag [#allocation4], %s297
        %s299 = sand.u32 %s183, 1
        %s300 = smul.addr %s299, 8
        %s301 = scalar_lea.vmem [#allocation7], %s300
        %p302 = scmp.lt.s32.totalorder %s23, 1
        %s303 = scalar_select %p302, %s23, 1
        %s304 = smul.addr %s303, 2
        %s305 = smul.addr %s304, 4
        %s306 = scalar_lea.vmem %s0, %s305
        %v307 = vld [vmem:[%s306] sm:$0xff]
        %v308 = vld [vmem:[%s1] sm:$0xff]
        %v309 = vmul.f32 %v307, %v308
        %311 = vst [vmem:[#allocation1] ss:$2 sm:$0xff] %v309
        %v312 = vld.sshfl [vmem:[#allocation1] sm:$0xff pattern:$0x75316420]
        %v313 = vld.sshfl [vmem:[#allocation1 + $0x8] sm:$0xff pattern:$0x75316420]
        %vm316 = vcmask 1043456
        %v317 = vsel %vm316, %v312, 0.0
        %v318 = vsel %vm316, %v313, 0.0
        %v319 = vadd.f32 %v317, %v318
        %320 = vadd.xlane.f32.xlu0 %v319
        %v321 = vpop.xlane.xlu0 %320
        %v322 = vld [vmem:[#allocation2] sm:$0x1]
        %v324 = vperm.slane %v322, 0
        %v325 = vlaneseq
        %v326 = vshrl.u32 %v325, 7
        %328 = vset.pattern.permute.xlu0 %v326
        %329 = vperm.xlu0 %328, %v324
        %v330 = vpop.permute.xlu0 %329
        %v332 = vadd.f32 %v321, %v330
        %v333 = vld [vmem:[%s3] sm:$0xf]
        %v334 = vld [vmem:[#allocation5] sm:$0x1]
        %336 = vset.pattern.permute.xlu0 0
        %337 = vperm.xlu0 %336, %v332
        %v338 = vpop.permute.xlu0 %337
        %v339 = vlaneseq
        %v340 = vand.u32 %v339, 127
        %v341 = vperm.slane %v338, %v340
        %vm342 = vcmask 31744
        %v343 = vsel %vm342, %v341, 0
        %v346 = vsel %vm316, %v333, 0
        %348 = vmatpush.msra.mxu0 0.0
        %349 = vmatpush.msra.mxu0 0.0
        %350 = vmatpush.msra.mxu0 0.0
        %351 = vmatpush.msra.mxu0 0.0
        %352 = vmatpush.msra.mxu0 0.0
        %353 = vmatpush.msra.mxu0 0.0
        %354 = vmatpush.msra.mxu0 0.0
        %355 = vmatpush.msra.mxu0 0.0
        %356 = vmatpush.msra.mxu0 0.0
        %357 = vmatpush.msra.mxu0 0.0
        %358 = vmatpush.msra.mxu0 0.0
        %359 = vmatpush.msra.mxu0 0.0
        %360 = vmatpush.msra.mxu0 0.0
        %361 = vmatpush.msra.mxu0 0.0
        %362 = vmatpush.msra.mxu0 0.0
        %363 = vmatpush.msra.mxu0 %v346
        %364 = vmatmul.f32.gmra.mxu0 %v343
        %v365 = vpop.f32.mrf.mxu0
        %v366 = vadd.f32 %v334, %v365
        %367 = vdwg.mxu0
        %v368 = vmax.f32 %v366, 0.0
        %v369 = vld [vmem:[%s5] sm:$0xff]
        %v370 = vld [vmem:[%s5 + $0x8] sm:$0xff]
        %v371 = vld [vmem:[%s5 + $0x10] sm:$0xff]
        %v372 = vld [vmem:[%s6] sm:$0x1]
        %vm373 = vcmask 195584
        %v375 = vsel %vm373, %v368, 0
        %377 = vmatpush.msra.mxu0 0.0
        %378 = vmatpush.msra.mxu0 0.0
        %379 = vmatpush.msra.mxu0 0.0
        %380 = vmatpush.msra.mxu0 0.0
        %381 = vmatpush.msra.mxu0 0.0
        %382 = vmatpush.msra.mxu0 0.0
        %383 = vmatpush.msra.mxu0 0.0
        %384 = vmatpush.msra.mxu0 0.0
        %385 = vmatpush.msra.mxu0 0.0
        %386 = vmatpush.msra.mxu0 0.0
        %387 = vmatpush.msra.mxu0 0.0
        %388 = vmatpush.msra.mxu0 0.0
        %389 = vmatpush.msra.mxu0 0.0
        %390 = vmatpush.msra.mxu0 %v371
        %391 = vmatpush.msra.mxu0 %v370
        %392 = vmatpush.msra.mxu0 %v369
        %393 = vmatmul.f32.gmra.mxu0 %v375
        %v394 = vpop.f32.mrf.mxu0
        %v395 = vadd.f32 %v372, %v394
        %396 = vdwg.mxu0
        %v397 = vxor.u32 %v395, 2147483648
        %v398 = vmul.f32 %v397, 1.442695
        %v399 = vpow.pop %v398
        %v400 = vadd.f32 %v399, 1.0
        %v401 = vrcp.pop %v400
        %v402 = vmul.f32 %v400, %v401
        %v403 = vsub.f32 1.0, %v402
        %v404 = vmul.f32 %v401, %v403
        %v405 = vadd.f32 %v401, %v404
        %vm406 = vweird.f32 %v400
        %vm407 = vweird.f32 %v401
        %vm408 = vmor %vm406, %vm407
        %v409 = vsel %vm408, %v401, %v405
        %v410 = vand.u32 2147483647, %v400
        %vm411 = vcmp.eq.f32.partialorder %v410, 8.507059e+37
        %v412 = vand.u32 %v400, 2147483648
        %v413 = vor.u32 1.1754944e-38, %v412
        %v414 = vsel %vm411, %v413, %v409
        %v415 = vmul.f32 1.0, %v414
        %v416 = vperm.slane %v415, 0
        %v417 = vlaneseq
        %v418 = vshrl.u32 %v417, 7
        %420 = vset.pattern.permute.xlu0 %v418
        %421 = vperm.xlu0 %420, %v416
        %v422 = vpop.permute.xlu0 %421
        %v425 = vunpack.c.l.s4 839922192
        %v426 = vunpack.c.0.s8 %v425
        %v427 = vperm.slane %v422, %v426
        %v429 = vmul.f32 %v307, %v427
        %430 = vst [vmem:[%s301] sm:$0xff] %v429
        %s431 = sand.u32 %s183, 1
        %s432 = scalar_lea.sflag [#allocation4], %s431
        %s433 = sand.u32 %s183, 1
        %s434 = smul.addr %s433, 8
        %s435 = scalar_lea.vmem [#allocation7], %s434
        // Predicated region
        $region57: #{tpu_custom_call.1} parent=47 // pred_check
          %p436 = pneg %p193
        $region58: #{tpu_custom_call.1} parent=47 // pred_check_branch
          %438 = sbr.rel (%p436) target = $region60
        $region59: #{tpu_custom_call.1} parent=47 // pred_region
          %440 = vsyncadd %s432, 0
          %s441 = smul.addr %s23, 2
          %s442 = smul.addr %s441, 4
          %s443 = scalar_lea.hbm %s7, %s442
          %s445 = sshll.u32 %s435, 4
          %s446 = int_to_ptr.vmem [resolvable:$true] %s445
          %s447 = sshll.u32 %s443, 4
          %s448 = int_to_ptr.hbm [resolvable:$true] %s447
          %450 = dma.vmem_to_hbm [thread:$0]  %s446, 128, %s448, %s432
        $region60: #{tpu_custom_call.1} parent=47 // pred_fallthru
          _
      $region48: #{tpu_custom_call.1} parent=5 // pred_fallthru
        _
      %p451 = scmp.le.s32.totalorder 2, %s18
      // Predicated region
      $region61: #{tpu_custom_call.1} parent=5 // pred_check
        %p452 = pneg %p451
      $region62: #{tpu_custom_call.1} parent=5 // pred_check_branch
        %454 = sbr.rel (%p452) target = $region64
      $region63: #{tpu_custom_call.1} parent=5 // pred_region
        %s455 = ssub.s32 %s18, 2
        // Predicated region
        $region65: #{tpu_custom_call.1} parent=63 // pred_check
          %p456 = pneg %p199
        $region66: #{tpu_custom_call.1} parent=63 // pred_check_branch
          %458 = sbr.rel (%p456) target = $region68
        $region67: #{tpu_custom_call.1} parent=63 // pred_region
          %s459 = sand.u32 %s184, 1
          %s460 = scalar_lea.sflag [#allocation4], %s459
          %s461 = sand.u32 %s184, 1
          %s462 = smul.addr %s461, 8
          %s463 = scalar_lea.vmem [#allocation7], %s462
          %465 = dma.done %s460, 128
        $region68: #{tpu_custom_call.1} parent=63 // pred_fallthru
          _
      $region64: #{tpu_custom_call.1} parent=5 // pred_fallthru
        _
    $region6: #{tpu_custom_call.1} parent=1 // loop_footer
      %s22 = sadd.s32 1, %s18
    $region7: #{tpu_custom_call.1} parent=1 // loop_footer_branch
      %17 = sbr.rel target = $region3
    $region8: #{tpu_custom_call.1} parent=1 // loop_exit
      _
    %466 = vsyncpa [#allocation3], 1
    %s467 = scalar_lea.sflag [#allocation3], 1
    %468 = vsyncpa %s467, 1
    %469 = vsyncpa [#allocation6], 1
    %470 = vsyncpa [#allocation4], 1
    %s471 = scalar_lea.sflag [#allocation4], 1
    %472 = vsyncpa %s471, 1

// kernel: tpu_custom_call.1
$region0: #{tpu_custom_call.1}
  #allocation0 [shape = 'u32[]', space=smem, size = 0x4, offset = 0x4, fixed_abs, tag = 'smem constant byte address 0x4 - core index']
  #allocation1 [shape = 'u32[72,128]{1,0:T(1,128)}', space=vmem, size = 0x9000, scoped, tag = 'internal scratch']
  %s0 = inlined_call_operand.vmem [shape: f32[2,4,256], index: 0, kind: input, shape index: {}]
  %s1 = inlined_call_operand.vmem [shape: f32[4,256], index: 1, kind: input, shape index: {}]
  %s2 = inlined_call_operand.hbm [shape: f32[1,4], index: 2, kind: input, shape index: {}]
  %s3 = inlined_call_operand.vmem [shape: f32[4,24], index: 3, kind: input, shape index: {}]
  %s4 = inlined_call_operand.hbm [shape: f32[1,24], index: 4, kind: input, shape index: {}]
  %s5 = inlined_call_operand.vmem [shape: f32[24,4], index: 5, kind: input, shape index: {}]
  %s6 = inlined_call_operand.vmem [shape: f32[1,4], index: 6, kind: input, shape index: {}]
  %s7 = inlined_call_operand.hbm [shape: f32[2,4,256], index: 7, kind: output, shape index: {}]
  %s8 = sld [smem:[#allocation0]]
  $region69: #{tpu_custom_call.1} parent=0
    _
  %s10 = ssub.s32 1, %s8
  %s11 = scalar_select 0, %s10, %s8
  $region1: #{tpu_custom_call.1} parent=0
    #allocation2 [shape = 'u8[512]{0}', space=vmem, size = 0x400, scoped, tag = 'input window, operand 2, single buffered']
    #allocation3 [shape = 's32[2]{0}', space=sflag, size = 0x8, scoped, tag = 'scoped memory for tpu_custom_call.1']
    #allocation4 [shape = 's32[2]{0}', space=sflag, size = 0x8, scoped, tag = 'scoped memory for tpu_custom_call.1']
    #allocation5 [shape = 'u8[512]{0}', space=vmem, size = 0x400, scoped, tag = 'input window, operand 4, single buffered']
    #allocation6 [shape = 's32[1]{0}', space=sflag, size = 0x4, scoped, tag = 'scoped memory for tpu_custom_call.1']
    #allocation7 [shape = 'u8[8192]{0}', space=vmem, size = 0x2000, scoped, tag = 'output window, operand 0']
    %12 = vsyncpa [#allocation3], 0
    %13 = vsyncpa [#allocation6], 0
    %14 = vsyncpa [#allocation4], 0
    %s15 = scalar_lea.sflag [#allocation4], 1
    %16 = vsyncpa %s15, 0
    loop: start=0, step=1, limit=4
    $region2: #{tpu_custom_call.1} parent=1 // loop_pre_header
      _
    $region3: #{tpu_custom_call.1} parent=1 // loop_header
      %s18 = sphi 0, %s22
      %p19 = scmp.ge.s32.totalorder %s18, 4
      %s28 = sphi 0, %s30
      %s31 = sphi 0, %s28
      %s32 = sphi 0, %s31
      %s48 = sphi 0, %s32
      %s52 = sphi 0, %s52
      %s54 = sphi 0, %s52
      %s55 = sphi 0, %s54
      %s69 = sphi 0, %s55
      %s73 = sphi 0, %s73
      %s75 = sphi 0, %s73
      %s76 = sphi 0, %s75
      %s90 = sphi 0, %s76
      %s94 = sphi 0, %s94
      %s96 = sphi 0, %s94
      %s97 = sphi 0, %s96
      %s111 = sphi 0, %s97
      %s115 = sphi 0, %s115
      %s117 = sphi 0, %s115
      %s118 = sphi 0, %s117
      %s132 = sphi 0, %s118
      %s136 = sphi 0, %s136
      %s138 = sphi 0, %s136
      %s139 = sphi 0, %s138
      %s153 = sphi 0, %s139
      %s157 = sphi 0, %s157
      %s159 = sphi 0, %s157
      %s160 = sphi 0, %s159
      %s174 = sphi 0, %s160
      %s180 = sphi 0, %s182
      %s183 = sphi 0, %s180
      %s184 = sphi 0, %s183
      %s200 = sphi 0, %s184
    $region4: #{tpu_custom_call.1} parent=1 // loop_header_branch
      %21 = sbr.rel (%p19) target = $region8
    $region5: #{tpu_custom_call.1} parent=1 // loop_body
      %s23 = ssub.s32 %s18, 1
      %s24 = ssub.s32 %s18, 2
      %s25 = sadd.s32 %s18, 1
      %s26 = ssub.s32 %s18, %s25
      %p27 = scmp.eq.s32.totalorder %s26, 0
      %s29 = sadd.s32 %s28, 1
      %s30 = scalar_select %p27, %s28, %s29
      %p33 = pneg %p27
      %p34 = scmp.eq.s32.totalorder %s18, 1
      %p35 = por %p33, %p34
      %p36 = scmp.ne.s32.totalorder %s28, %s31
      %p37 = scmp.eq.s32.totalorder %s18, 0
      %p38 = por %p36, %p37
      %p39 = scmp.ne.s32.totalorder %s28, %s31
      %p40 = scmp.eq.s32.totalorder %s23, 1
      %p41 = por %p39, %p40
      %p42 = scmp.ne.s32.totalorder %s31, %s32
      %p43 = scmp.eq.s32.totalorder %s23, 0
      %p44 = por %p42, %p43
      %p45 = scmp.ne.s32.totalorder %s31, %s32
      %p46 = scmp.eq.s32.totalorder %s24, 1
      %p47 = por %p45, %p46
      %p49 = scmp.ne.s32.totalorder %s32, %s48
      %p50 = scmp.eq.s32.totalorder %s24, 0
      %p51 = por %p49, %p50
      %s53 = sadd.s32 %s52, 1
      %p56 = scmp.eq.s32.totalorder %s18, 1
      %p57 = scmp.ne.s32.totalorder %s52, %s54
      %p58 = scmp.eq.s32.totalorder %s18, 0
      %p59 = por %p57, %p58
      %p60 = scmp.ne.s32.totalorder %s52, %s54
      %p61 = scmp.eq.s32.totalorder %s23, 1
      %p62 = por %p60, %p61
      %p63 = scmp.ne.s32.totalorder %s54, %s55
      %p64 = scmp.eq.s32.totalorder %s23, 0
      %p65 = por %p63, %p64
      %p66 = scmp.ne.s32.totalorder %s54, %s55
      %p67 = scmp.eq.s32.totalorder %s24, 1
      %p68 = por %p66, %p67
      %p70 = scmp.ne.s32.totalorder %s55, %s69
      %p71 = scmp.eq.s32.totalorder %s24, 0
      %p72 = por %p70, %p71
      %s74 = sadd.s32 %s73, 1
      %p77 = scmp.eq.s32.totalorder %s18, 1
      %p78 = scmp.ne.s32.totalorder %s73, %s75
      %p79 = scmp.eq.s32.totalorder %s18, 0
      %p80 = por %p78, %p79
      %p81 = scmp.ne.s32.totalorder %s73, %s75
      %p82 = scmp.eq.s32.totalorder %s23, 1
      %p83 = por %p81, %p82
      %p84 = scmp.ne.s32.totalorder %s75, %s76
      %p85 = scmp.eq.s32.totalorder %s23, 0
      %p86 = por %p84, %p85
      %p87 = scmp.ne.s32.totalorder %s75, %s76
      %p88 = scmp.eq.s32.totalorder %s24, 1
      %p89 = por %p87, %p88
      %p91 = scmp.ne.s32.totalorder %s76, %s90
      %p92 = scmp.eq.s32.totalorder %s24, 0
      %p93 = por %p91, %p92
      %s95 = sadd.s32 %s94, 1
      %p98 = scmp.eq.s32.totalorder %s18, 1
      %p99 = scmp.ne.s32.totalorder %s94, %s96
      %p100 = scmp.eq.s32.totalorder %s18, 0
      %p101 = por %p99, %p100
      %p102 = scmp.ne.s32.totalorder %s94, %s96
      %p103 = scmp.eq.s32.totalorder %s23, 1
      %p104 = por %p102, %p103
      %p105 = scmp.ne.s32.totalorder %s96, %s97
      %p106 = scmp.eq.s32.totalorder %s23, 0
      %p107 = por %p105, %p106
      %p108 = scmp.ne.s32.totalorder %s96, %s97
      %p109 = scmp.eq.s32.totalorder %s24, 1
      %p110 = por %p108, %p109
      %p112 = scmp.ne.s32.totalorder %s97, %s111
      %p113 = scmp.eq.s32.totalorder %s24, 0
      %p114 = por %p112, %p113
      %s116 = sadd.s32 %s115, 1
      %p119 = scmp.eq.s32.totalorder %s18, 1
      %p120 = scmp.ne.s32.totalorder %s115, %s117
      %p121 = scmp.eq.s32.totalorder %s18, 0
      %p122 = por %p120, %p121
      %p123 = scmp.ne.s32.totalorder %s115, %s117
      %p124 = scmp.eq.s32.totalorder %s23, 1
      %p125 = por %p123, %p124
      %p126 = scmp.ne.s32.totalorder %s117, %s118
      %p127 = scmp.eq.s32.totalorder %s23, 0
      %p128 = por %p126, %p127
      %p129 = scmp.ne.s32.totalorder %s117, %s118
      %p130 = scmp.eq.s32.totalorder %s24, 1
      %p131 = por %p129, %p130
      %p133 = scmp.ne.s32.totalorder %s118, %s132
      %p134 = scmp.eq.s32.totalorder %s24, 0
      %p135 = por %p133, %p134
      %s137 = sadd.s32 %s136, 1
      %p140 = scmp.eq.s32.totalorder %s18, 1
      %p141 = scmp.ne.s32.totalorder %s136, %s138
      %p142 = scmp.eq.s32.totalorder %s18, 0
      %p143 = por %p141, %p142
      %p144 = scmp.ne.s32.totalorder %s136, %s138
      %p145 = scmp.eq.s32.totalorder %s23, 1
      %p146 = por %p144, %p145
      %p147 = scmp.ne.s32.totalorder %s138, %s139
      %p148 = scmp.eq.s32.totalorder %s23, 0
      %p149 = por %p147, %p148
      %p150 = scmp.ne.s32.totalorder %s138, %s139
      %p151 = scmp.eq.s32.totalorder %s24, 1
      %p152 = por %p150, %p151
      %p154 = scmp.ne.s32.totalorder %s139, %s153
      %p155 = scmp.eq.s32.totalorder %s24, 0
      %p156 = por %p154, %p155
      %s158 = sadd.s32 %s157, 1
      %p161 = scmp.eq.s32.totalorder %s18, 1
      %p162 = scmp.ne.s32.totalorder %s157, %s159
      %p163 = scmp.eq.s32.totalorder %s18, 0
      %p164 = por %p162, %p163
      %p165 = scmp.ne.s32.totalorder %s157, %s159
      %p166 = scmp.eq.s32.totalorder %s23, 1
      %p167 = por %p165, %p166
      %p168 = scmp.ne.s32.totalorder %s159, %s160
      %p169 = scmp.eq.s32.totalorder %s23, 0
      %p170 = por %p168, %p169
      %p171 = scmp.ne.s32.totalorder %s159, %s160
      %p172 = scmp.eq.s32.totalorder %s24, 1
      %p173 = por %p171, %p172
      %p175 = scmp.ne.s32.totalorder %s160, %s174
      %p176 = scmp.eq.s32.totalorder %s24, 0
      %p177 = por %p175, %p176
      %s178 = ssub.s32 %s18, %s25
      %p179 = scmp.eq.s32.totalorder %s178, 0
      %s181 = sadd.s32 %s180, 1
      %s182 = scalar_select %p179, %s180, %s181
      %p185 = pneg %p179
      %p186 = scmp.eq.s32.totalorder %s18, 1
      %p187 = por %p185, %p186
      %p188 = scmp.ne.s32.totalorder %s180, %s183
      %p189 = scmp.eq.s32.totalorder %s18, 0
      %p190 = por %p188, %p189
      %p191 = scmp.ne.s32.totalorder %s180, %s183
      %p192 = scmp.eq.s32.totalorder %s23, 1
      %p193 = por %p191, %p192
      %p194 = scmp.ne.s32.totalorder %s183, %s184
      %p195 = scmp.eq.s32.totalorder %s23, 0
      %p196 = por %p194, %p195
      %p197 = scmp.ne.s32.totalorder %s183, %s184
      %p198 = scmp.eq.s32.totalorder %s24, 1
      %p199 = por %p197, %p198
      %p201 = scmp.ne.s32.totalorder %s184, %s200
      %p202 = scmp.eq.s32.totalorder %s24, 0
      %p203 = por %p201, %p202
      %p204 = scmp.le.s32.totalorder 1, %s18
      %p205 = scmp.lt.s32.totalorder %s18, 3
      %p206 = pnand %p204, %p205
      %p207 = pneg %p206
      // Predicated region
      $region9: #{tpu_custom_call.1} parent=5 // pred_check
        _
      $region10: #{tpu_custom_call.1} parent=5 // pred_check_branch
        %209 = sbr.rel (%p206) target = $region12
      $region11: #{tpu_custom_call.1} parent=5 // pred_region
        %s210 = ssub.s32 %s18, 1
        // Predicated region
        $region13: #{tpu_custom_call.1} parent=11 // pred_check
          %p211 = pneg %p65
        $region14: #{tpu_custom_call.1} parent=11 // pred_check_branch
          %213 = sbr.rel (%p211) target = $region16
        $region15: #{tpu_custom_call.1} parent=11 // pred_region
          _
        $region16: #{tpu_custom_call.1} parent=11 // pred_fallthru
          _
        // Predicated region
        $region17: #{tpu_custom_call.1} parent=11 // pred_check
          %p214 = pneg %p86
        $region18: #{tpu_custom_call.1} parent=11 // pred_check_branch
          %216 = sbr.rel (%p214) target = $region20
        $region19: #{tpu_custom_call.1} parent=11 // pred_region
          %218 = vsyncadd [#allocation3], 0
          %s220 = sshll.u32 %s2, 4
          %s221 = int_to_ptr.hbm [resolvable:$true] %s220
          %s222 = sshll.u32 [#allocation2], 4
          %s223 = int_to_ptr.vmem [resolvable:$true] %s222
          %225 = dma.hbm_to_vmem [thread:$0]  %s221, 16, %s223, [#allocation3]
        $region20: #{tpu_custom_call.1} parent=11 // pred_fallthru
          _
        // Predicated region
        $region21: #{tpu_custom_call.1} parent=11 // pred_check
          %p226 = pneg %p107
        $region22: #{tpu_custom_call.1} parent=11 // pred_check_branch
          %228 = sbr.rel (%p226) target = $region24
        $region23: #{tpu_custom_call.1} parent=11 // pred_region
          _
        $region24: #{tpu_custom_call.1} parent=11 // pred_fallthru
          _
        // Predicated region
        $region25: #{tpu_custom_call.1} parent=11 // pred_check
          %p229 = pneg %p128
        $region26: #{tpu_custom_call.1} parent=11 // pred_check_branch
          %231 = sbr.rel (%p229) target = $region28
        $region27: #{tpu_custom_call.1} parent=11 // pred_region
          %233 = vsyncadd [#allocation6], 0
          %s235 = sshll.u32 %s4, 4
          %s236 = int_to_ptr.hbm [resolvable:$true] %s235
          %s237 = sshll.u32 [#allocation5], 4
          %s238 = int_to_ptr.vmem [resolvable:$true] %s237
          %240 = dma.hbm_to_vmem [thread:$0]  %s236, 16, %s238, [#allocation6]
        $region28: #{tpu_custom_call.1} parent=11 // pred_fallthru
          _
        // Predicated region
        $region29: #{tpu_custom_call.1} parent=11 // pred_check
          %p241 = pneg %p149
        $region30: #{tpu_custom_call.1} parent=11 // pred_check_branch
          %243 = sbr.rel (%p241) target = $region32
        $region31: #{tpu_custom_call.1} parent=11 // pred_region
          _
        $region32: #{tpu_custom_call.1} parent=11 // pred_fallthru
          _
        // Predicated region
        $region33: #{tpu_custom_call.1} parent=11 // pred_check
          %p244 = pneg %p170
        $region34: #{tpu_custom_call.1} parent=11 // pred_check_branch
          %246 = sbr.rel (%p244) target = $region36
        $region35: #{tpu_custom_call.1} parent=11 // pred_region
          _
        $region36: #{tpu_custom_call.1} parent=11 // pred_fallthru
          _
      $region12: #{tpu_custom_call.1} parent=5 // pred_fallthru
        _
      %p247 = scmp.lt.s32.totalorder %s18, 2
      // Predicated region
      $region37: #{tpu_custom_call.1} parent=5 // pred_check
        %p248 = pneg %p247
      $region38: #{tpu_custom_call.1} parent=5 // pred_check_branch
        %250 = sbr.rel (%p248) target = $region40
      $region39: #{tpu_custom_call.1} parent=5 // pred_region
        // Predicated region
        $region41: #{tpu_custom_call.1} parent=39 // pred_check
          %p251 = pneg %p38
        $region42: #{tpu_custom_call.1} parent=39 // pred_check_branch
          %253 = sbr.rel (%p251) target = $region44
        $region43: #{tpu_custom_call.1} parent=39 // pred_region
          %p254 = scmp.lt.s32.totalorder %s18, 1
          %s255 = scalar_select %p254, %s18, 1
          %s256 = smul.addr %s255, 2
          %s257 = smul.addr %s256, 4
          %s258 = scalar_lea.vmem %s0, %s257
        $region44: #{tpu_custom_call.1} parent=39 // pred_fallthru
          _
      $region40: #{tpu_custom_call.1} parent=5 // pred_fallthru
        _
      %p259 = scmp.le.s32.totalorder 1, %s18
      %p260 = scmp.lt.s32.totalorder %s18, 3
      %p261 = pnand %p259, %p260
      %p262 = pneg %p261
      // Predicated region
      $region45: #{tpu_custom_call.1} parent=5 // pred_check
        _
      $region46: #{tpu_custom_call.1} parent=5 // pred_check_branch
        %264 = sbr.rel (%p261) target = $region48
      $region47: #{tpu_custom_call.1} parent=5 // pred_region
        %s265 = ssub.s32 %s18, 1
        // Predicated region
        $region49: #{tpu_custom_call.1} parent=47 // pred_check
          %p266 = pneg %p86
        $region50: #{tpu_custom_call.1} parent=47 // pred_check_branch
          %268 = sbr.rel (%p266) target = $region52
        $region51: #{tpu_custom_call.1} parent=47 // pred_region
          %270 = dma.done [#allocation3], 16
        $region52: #{tpu_custom_call.1} parent=47 // pred_fallthru
          _
        // Predicated region
        $region53: #{tpu_custom_call.1} parent=47 // pred_check
          %p271 = pneg %p128
        $region54: #{tpu_custom_call.1} parent=47 // pred_check_branch
          %273 = sbr.rel (%p271) target = $region56
        $region55: #{tpu_custom_call.1} parent=47 // pred_region
          %275 = dma.done [#allocation6], 16
        $region56: #{tpu_custom_call.1} parent=47 // pred_fallthru
          _
        %p276 = scmp.lt.s32.totalorder %s23, 1
        %s277 = scalar_select %p276, %s23, 1
        %s278 = smul.addr %s277, 2
        %s279 = smul.addr %s278, 4
        %s280 = scalar_lea.vmem %s0, %s279
        %p281 = pneg %p44
        %p282 = pneg %p41
        %p283 = pneg %p65
        %p284 = pneg %p62
        %p285 = pneg %p86
        %p286 = pneg %p83
        %p287 = pneg %p107
        %p288 = pneg %p104
        %p289 = pneg %p128
        %p290 = pneg %p125
        %p291 = pneg %p149
        %p292 = pneg %p146
        %p293 = pneg %p170
        %p294 = pneg %p167
        %p295 = pneg %p196
        %p296 = pneg %p193
        %s297 = sand.u32 %s183, 1
        %s298 = scalar_lea.sflag [#allocation4], %s297
        %s299 = sand.u32 %s183, 1
        %s300 = smul.addr %s299, 8
        %s301 = scalar_lea.vmem [#allocation7], %s300
        %p302 = scmp.lt.s32.totalorder %s23, 1
        %s303 = scalar_select %p302, %s23, 1
        %s304 = smul.addr %s303, 2
        %s305 = smul.addr %s304, 4
        %s306 = scalar_lea.vmem %s0, %s305
        %v307 = vld [vmem:[%s306] sm:$0xff]
        %v308 = vld [vmem:[%s1] sm:$0xff]
        %v309 = vmul.f32 %v307, %v308
        %311 = vst [vmem:[#allocation1] ss:$2 sm:$0xff] %v309
        %v312 = vld.sshfl [vmem:[#allocation1] sm:$0xff pattern:$0x75316420]
        %v313 = vld.sshfl [vmem:[#allocation1 + $0x8] sm:$0xff pattern:$0x75316420]
        %vm316 = vcmask 1043456
        %v317 = vsel %vm316, %v312, 0.0
        %v318 = vsel %vm316, %v313, 0.0
        %v319 = vadd.f32 %v317, %v318
        %320 = vadd.xlane.f32.xlu0 %v319
        %v321 = vpop.xlane.xlu0 %320
        %v322 = vld [vmem:[#allocation2] sm:$0x1]
        %v324 = vperm.slane %v322, 0
        %v325 = vlaneseq
        %v326 = vshrl.u32 %v325, 7
        %328 = vset.pattern.permute.xlu0 %v326
        %329 = vperm.xlu0 %328, %v324
        %v330 = vpop.permute.xlu0 %329
        %v332 = vadd.f32 %v321, %v330
        %v333 = vld [vmem:[%s3] sm:$0xf]
        %v334 = vld [vmem:[#allocation5] sm:$0x1]
        %336 = vset.pattern.permute.xlu0 0
        %337 = vperm.xlu0 %336, %v332
        %v338 = vpop.permute.xlu0 %337
        %v339 = vlaneseq
        %v340 = vand.u32 %v339, 127
        %v341 = vperm.slane %v338, %v340
        %vm342 = vcmask 31744
        %v343 = vsel %vm342, %v341, 0
        %v346 = vsel %vm316, %v333, 0
        %348 = vmatpush.msra.mxu0 0.0
        %349 = vmatpush.msra.mxu0 0.0
        %350 = vmatpush.msra.mxu0 0.0
        %351 = vmatpush.msra.mxu0 0.0
        %352 = vmatpush.msra.mxu0 0.0
        %353 = vmatpush.msra.mxu0 0.0
        %354 = vmatpush.msra.mxu0 0.0
        %355 = vmatpush.msra.mxu0 0.0
        %356 = vmatpush.msra.mxu0 0.0
        %357 = vmatpush.msra.mxu0 0.0
        %358 = vmatpush.msra.mxu0 0.0
        %359 = vmatpush.msra.mxu0 0.0
        %360 = vmatpush.msra.mxu0 0.0
        %361 = vmatpush.msra.mxu0 0.0
        %362 = vmatpush.msra.mxu0 0.0
        %363 = vmatpush.msra.mxu0 %v346
        %364 = vmatmul.f32.gmra.mxu0 %v343
        %v365 = vpop.f32.mrf.mxu0
        %v366 = vadd.f32 %v334, %v365
        %367 = vdwg.mxu0
        %v368 = vmax.f32 %v366, 0.0
        %v369 = vld [vmem:[%s5] sm:$0xff]
        %v370 = vld [vmem:[%s5 + $0x8] sm:$0xff]
        %v371 = vld [vmem:[%s5 + $0x10] sm:$0xff]
        %v372 = vld [vmem:[%s6] sm:$0x1]
        %vm373 = vcmask 195584
        %v375 = vsel %vm373, %v368, 0
        %377 = vmatpush.msra.mxu0 0.0
        %378 = vmatpush.msra.mxu0 0.0
        %379 = vmatpush.msra.mxu0 0.0
        %380 = vmatpush.msra.mxu0 0.0
        %381 = vmatpush.msra.mxu0 0.0
        %382 = vmatpush.msra.mxu0 0.0
        %383 = vmatpush.msra.mxu0 0.0
        %384 = vmatpush.msra.mxu0 0.0
        %385 = vmatpush.msra.mxu0 0.0
        %386 = vmatpush.msra.mxu0 0.0
        %387 = vmatpush.msra.mxu0 0.0
        %388 = vmatpush.msra.mxu0 0.0
        %389 = vmatpush.msra.mxu0 0.0
        %390 = vmatpush.msra.mxu0 %v371
        %391 = vmatpush.msra.mxu0 %v370
        %392 = vmatpush.msra.mxu0 %v369
        %393 = vmatmul.f32.gmra.mxu0 %v375
        %v394 = vpop.f32.mrf.mxu0
        %v395 = vadd.f32 %v372, %v394
        %396 = vdwg.mxu0
        %v397 = vxor.u32 %v395, 2147483648
        %v398 = vmul.f32 %v397, 1.442695
        %v399 = vpow.pop %v398
        %v400 = vadd.f32 %v399, 1.0
        %v401 = vrcp.pop %v400
        %v402 = vmul.f32 %v400, %v401
        %v403 = vsub.f32 1.0, %v402
        %v404 = vmul.f32 %v401, %v403
        %v405 = vadd.f32 %v401, %v404
        %vm406 = vweird.f32 %v400
        %vm407 = vweird.f32 %v401
        %vm408 = vmor %vm406, %vm407
        %v409 = vsel %vm408, %v401, %v405
        %v410 = vand.u32 2147483647, %v400
        %vm411 = vcmp.eq.f32.partialorder %v410, 8.507059e+37
        %v412 = vand.u32 %v400, 2147483648
        %v413 = vor.u32 1.1754944e-38, %v412
        %v414 = vsel %vm411, %v413, %v409
        %v415 = vmul.f32 1.0, %v414
        %v416 = vperm.slane %v415, 0
        %v417 = vlaneseq
        %v418 = vshrl.u32 %v417, 7
        %420 = vset.pattern.permute.xlu0 %v418
        %421 = vperm.xlu0 %420, %v416
        %v422 = vpop.permute.xlu0 %421
        %v425 = vunpack.c.l.s4 839922192
        %v426 = vunpack.c.0.s8 %v425
        %v427 = vperm.slane %v422, %v426
        %v429 = vmul.f32 %v307, %v427
        %430 = vst [vmem:[%s301] sm:$0xff] %v429
        %s431 = sand.u32 %s183, 1
        %s432 = scalar_lea.sflag [#allocation4], %s431
        %s433 = sand.u32 %s183, 1
        %s434 = smul.addr %s433, 8
        %s435 = scalar_lea.vmem [#allocation7], %s434
        // Predicated region
        $region57: #{tpu_custom_call.1} parent=47 // pred_check
          %p436 = pneg %p193
        $region58: #{tpu_custom_call.1} parent=47 // pred_check_branch
          %438 = sbr.rel (%p436) target = $region60
        $region59: #{tpu_custom_call.1} parent=47 // pred_region
          %440 = vsyncadd %s432, 0
          %s441 = smul.addr %s23, 2
          %s442 = smul.addr %s441, 4
          %s443 = scalar_lea.hbm %s7, %s442
          %s445 = sshll.u32 %s435, 4
          %s446 = int_to_ptr.vmem [resolvable:$true] %s445
          %s447 = sshll.u32 %s443, 4
          %s448 = int_to_ptr.hbm [resolvable:$true] %s447
          %450 = dma.vmem_to_hbm [thread:$0]  %s446, 128, %s448, %s432
        $region60: #{tpu_custom_call.1} parent=47 // pred_fallthru
          _
      $region48: #{tpu_custom_call.1} parent=5 // pred_fallthru
        _
      %p451 = scmp.le.s32.totalorder 2, %s18
      // Predicated region
      $region61: #{tpu_custom_call.1} parent=5 // pred_check
        %p452 = pneg %p451
      $region62: #{tpu_custom_call.1} parent=5 // pred_check_branch
        %454 = sbr.rel (%p452) target = $region64
      $region63: #{tpu_custom_call.1} parent=5 // pred_region
        %s455 = ssub.s32 %s18, 2
        // Predicated region
        $region65: #{tpu_custom_call.1} parent=63 // pred_check
          %p456 = pneg %p199
        $region66: #{tpu_custom_call.1} parent=63 // pred_check_branch
          %458 = sbr.rel (%p456) target = $region68
        $region67: #{tpu_custom_call.1} parent=63 // pred_region
          %s459 = sand.u32 %s184, 1
          %s460 = scalar_lea.sflag [#allocation4], %s459
          %s461 = sand.u32 %s184, 1
          %s462 = smul.addr %s461, 8
          %s463 = scalar_lea.vmem [#allocation7], %s462
          %465 = dma.done %s460, 128
        $region68: #{tpu_custom_call.1} parent=63 // pred_fallthru
          _
      $region64: #{tpu_custom_call.1} parent=5 // pred_fallthru
        _
    $region6: #{tpu_custom_call.1} parent=1 // loop_footer
      %s22 = sadd.s32 1, %s18
    $region7: #{tpu_custom_call.1} parent=1 // loop_footer_branch
      %17 = sbr.rel target = $region3
    $region8: #{tpu_custom_call.1} parent=1 // loop_exit
      _
    %466 = vsyncpa [#allocation3], 1
    %s467 = scalar_lea.sflag [#allocation3], 1
    %468 = vsyncpa %s467, 1
    %469 = vsyncpa [#allocation6], 1
    %470 = vsyncpa [#allocation4], 1
    %s471 = scalar_lea.sflag [#allocation4], 1
    %472 = vsyncpa %s471, 1

</llo_original>
